<compile_context>
chip_gen: v5e
topology: v5e:2x2
jax: 0.10.0
libtpu: 0.0.40
codegen_flags: <defaults>
</compile_context>

<pallas_src>
import functools

import jax
import jax.numpy as jnp
from jax import lax
from jax.experimental import pallas as pl
from jax.experimental.pallas import tpu as pltpu


def _round_up(x, m):
    return (x + m - 1) // m * m


def _cdiv(a, b):
    return (a + b - 1) // b


def _fused_kernel(idx_ref, tgt_ref, emb_hbm, w1_ref, b1_ref, w2_ref, b2_ref,
                  logits_ref, lse_ref, picked_ref,
                  x_buf, h_buf, m_acc, s_acc, p_acc, sem,
                  *, v_real, tile_v, with_loss, mask_vpad):
    # idx_ref:  (N_pad,)        int32 token ids (SMEM, scalar-prefetched)
    # tgt_ref:  (tile_n, 1)     int32 targets tile (VMEM)
    # emb_hbm:  (V, Dp)         f32 embedding table (HBM, manual DMA gather)
    # w1_ref:   (Dp, Dp) bf16   w2_ref: (Dp, tile_v) bf16
    # b1_ref:   (1, Dp)  f32    b2_ref: (1, tile_v)  f32
    # logits_ref: (tile_n, tile_v) f32 ; lse/picked: (tile_n, 1) f32
    # x_buf: (tile_n, Dp) f32 ; h_buf: (tile_n, Dp) bf16 ; m/s/p: (tile_n, 1)
    i = pl.program_id(0)                       # row (token) tile
    j = pl.program_id(1)                       # vocab tile (innermost)
    tile_n = x_buf.shape[0]

    # -------- once per row tile: gather embedding rows + first matmul -------
    @pl.when(j == 0)
    def _():
        base = i * tile_n

        @pl.loop(0, tile_n)
        def _issue(r):
            row = idx_ref[base + r]
            pltpu.make_async_copy(emb_hbm.at[pl.ds(row, 1), :],
                                  x_buf.at[pl.ds(r, 1), :], sem).start()

        @pl.loop(0, tile_n)
        def _drain(r):
            row = idx_ref[base + r]
            pltpu.make_async_copy(emb_hbm.at[pl.ds(row, 1), :],
                                  x_buf.at[pl.ds(r, 1), :], sem).wait()

        h = jnp.dot(x_buf[...].astype(jnp.bfloat16), w1_ref[...],
                    preferred_element_type=jnp.float32)
        h = jnp.maximum(h + b1_ref[...], 0.0)          # bias + ReLU in f32
        h_buf[...] = h.astype(h_buf.dtype)             # cache bf16 for the MXU
        if with_loss:
            m_acc[...] = jnp.full_like(m_acc, -1e30)
            s_acc[...] = jnp.zeros_like(s_acc)
            p_acc[...] = jnp.zeros_like(p_acc)

    # -------- per vocab tile: second matmul (+ online softmax stats) --------
    out = jnp.dot(h_buf[...], w2_ref[...], preferred_element_type=jnp.float32)
    out = out + b2_ref[...]
    if mask_vpad:
        cols = lax.broadcasted_iota(jnp.int32, out.shape, 1) + j * tile_v
        out = jnp.where(cols < v_real, out, -1e30)     # neutralize vocab pad
    logits_ref[...] = out.astype(logits_ref.dtype)

    if with_loss:
        cols = lax.broadcasted_iota(jnp.int32, out.shape, 1) + j * tile_v
        tgt = tgt_ref[...]                              # (tile_n, 1) int32
        p_acc[...] += jnp.sum(jnp.where(cols == tgt, out, 0.0),
                              axis=1, keepdims=True)
        m_new = jnp.maximum(m_acc[...], jnp.max(out, axis=1, keepdims=True))
        s_acc[...] = (s_acc[...] * jnp.exp(m_acc[...] - m_new)
                      + jnp.sum(jnp.exp(out - m_new), axis=1, keepdims=True))
        m_acc[...] = m_new

    @pl.when(j == pl.num_programs(1) - 1)
    def _():
        if with_loss:
            lse_ref[...] = m_acc[...] + jnp.log(s_acc[...])
            picked_ref[...] = p_acc[...]
        else:
            lse_ref[...] = jnp.zeros_like(lse_ref)
            picked_ref[...] = jnp.zeros_like(picked_ref)


@functools.partial(jax.jit,
                   static_argnames=("v_real", "tile_n", "tile_v", "with_loss"))
def fused_forward(idx_flat, tgt_flat, emb, w1, b1, w2, b2, *, v_real,
                  tile_n=256, tile_v=512, with_loss=False):
    """Fused embedding-gather + MLP (+ online cross-entropy stats).

    idx_flat/tgt_flat: [N] int32.  Returns (logits [N_pad, Vp] f32,
    lse [N_pad, 1] f32, picked [N_pad, 1] f32).
    """
    n = idx_flat.shape[0]
    d = w1.shape[0]
    vp = w2.shape[1]
    assert d % 128 == 0 and vp % 128 == 0
    assert emb.shape[1] == d and b1.shape == (1, d) and b2.shape == (1, vp)

    # Row (token) tiling: 128-aligned; keep >=2 row tiles when there is enough
    # work so the 'parallel' axis shards across both TensorCores (v7x).
    tile_n = max(128, (tile_n // 128) * 128)
    if n > 128:
        tile_n = min(tile_n, _round_up(_cdiv(n, 2), 128))
    tile_n = min(tile_n, _round_up(n, 128))
    grid_n = _cdiv(n, tile_n)
    n_pad = grid_n * tile_n

    # Vocab tiling: bound VMEM at large vocab; tile_v must divide Vp.
    tile_v = max(128, (tile_v // 128) * 128)
    tile_v = min(tile_v, vp)
    while vp % tile_v:                      # vp is a multiple of 128
        tile_v -= 128
    grid_v = vp // tile_v

    # Pad the cheap int32 vectors (never the activation). Pad ids = 0 so the
    # gather DMA stays in bounds; pad rows are sliced off by the caller.
    idx_p = jnp.pad(idx_flat.astype(jnp.int32), (0, n_pad - n))
    tgt_p = jnp.pad(tgt_flat.astype(jnp.int32), (0, n_pad - n)).reshape(n_pad, 1)

    kernel = functools.partial(_fused_kernel, v_real=v_real, tile_v=tile_v,
                               with_loss=with_loss, mask_vpad=(vp != v_real))

    logits, lse, picked = pl.pallas_call(
        kernel,
        out_shape=(jax.ShapeDtypeStruct((n_pad, vp), jnp.float32),
                   jax.ShapeDtypeStruct((n_pad, 1), jnp.float32),
                   jax.ShapeDtypeStruct((n_pad, 1), jnp.float32)),
        grid_spec=pltpu.PrefetchScalarGridSpec(
            num_scalar_prefetch=1,                         # idx -> SMEM
            grid=(grid_n, grid_v),
            in_specs=[
                pl.BlockSpec((tile_n, 1), lambda i, j, idx: (i, 0)),   # targets
                pl.BlockSpec(memory_space=pl.ANY),                     # emb HBM
                pl.BlockSpec((d, d), lambda i, j, idx: (0, 0)),        # W1
                pl.BlockSpec((1, d), lambda i, j, idx: (0, 0)),        # b1
                pl.BlockSpec((d, tile_v), lambda i, j, idx: (0, j)),   # W2 tile
                pl.BlockSpec((1, tile_v), lambda i, j, idx: (0, j)),   # b2 tile
            ],
            out_specs=(
                pl.BlockSpec((tile_n, tile_v), lambda i, j, idx: (i, j)),
                pl.BlockSpec((tile_n, 1), lambda i, j, idx: (i, 0)),
                pl.BlockSpec((tile_n, 1), lambda i, j, idx: (i, 0)),
            ),
            scratch_shapes=[
                pltpu.VMEM((tile_n, d), jnp.float32),    # gathered x rows
                pltpu.VMEM((tile_n, d), jnp.bfloat16),   # cached hidden h
                pltpu.VMEM((tile_n, 1), jnp.float32),    # running max
                pltpu.VMEM((tile_n, 1), jnp.float32),    # running sum(exp)
                pltpu.VMEM((tile_n, 1), jnp.float32),    # picked-logit acc
                pltpu.SemaphoreType.DMA,                 # gather DMA sem
            ],
        ),
        compiler_params=pltpu.CompilerParams(
            dimension_semantics=("parallel", "arbitrary"),
            vmem_limit_bytes=64 * 1024 * 1024,
        ),
    )(idx_p, tgt_p, emb, w1, b1, w2, b2)
    return logits, lse, picked


class SimpleModelPallas:
    """JAX/Pallas port of the PyTorch SimpleModel."""

    def __init__(self, config, key):
        self.config = config
        v, d = config["vocab_size"], config["d_model"]
        k_emb, k_w1, k_b1, k_w2, k_b2 = jax.random.split(key, 5)
        # Deterministic synthetic init (roughly nn.Linear's scale).
        emb = jax.random.normal(k_emb, (v, d), jnp.float32)
        lim = 1.0 / (d ** 0.5)
        w1 = jax.random.uniform(k_w1, (d, d), jnp.float32, -lim, lim)
        b1 = jax.random.uniform(k_b1, (d,), jnp.float32, -lim, lim)
        w2 = jax.random.uniform(k_w2, (d, v), jnp.float32, -lim, lim)
        b2 = jax.random.uniform(k_b2, (v,), jnp.float32, -lim, lim)
        n_params = emb.size + w1.size + b1.size + w2.size + b2.size
        print("Model parameters:", n_params)

        # Pad feature / vocab dims once to lane multiples of 128.  The
        # embedding table stays f32 (rows are DMA-gathered and cast to bf16
        # inside the kernel); the MXU weights are bf16, biases f32.
        dp, vp = _round_up(d, 128), _round_up(v, 128)
        self.d, self.v, self.dp, self.vp = d, v, dp, vp
        self.emb = jnp.pad(emb, ((0, 0), (0, dp - d)))                   # f32
        self.w1 = jnp.pad(w1, ((0, dp - d), (0, dp - d))).astype(jnp.bfloat16)
        self.b1 = jnp.pad(b1, (0, dp - d)).reshape(1, dp)                # f32
        self.w2 = jnp.pad(w2, ((0, dp - d), (0, vp - v))).astype(jnp.bfloat16)
        self.b2 = jnp.pad(b2, (0, vp - v)).reshape(1, vp)                # f32

    def __call__(self, idx, targets=None):
        b, t = idx.shape
        n = b * t
        idx_flat = idx.reshape(-1).astype(jnp.int32)
        with_loss = targets is not None
        tgt_flat = (targets.reshape(-1).astype(jnp.int32) if with_loss
                    else jnp.zeros((n,), jnp.int32))
        logits_p, lse, picked = fused_forward(
            idx_flat, tgt_flat, self.emb, self.w1, self.b1, self.w2, self.b2,
            v_real=self.v, with_loss=with_loss)
        logits = logits_p[:n, : self.v].reshape(b, t, self.v)
        if with_loss:
            # Cross-entropy from the kernel's fused logsumexp / picked logit.
            loss = jnp.mean(lse[:n, 0] - picked[:n, 0])
            return logits, loss
        return logits


if __name__ == "__main__":
    config = {"vocab_size": 256, "d_model": 128}
    key = jax.random.PRNGKey(0)
    k_model, k_idx, k_tgt = jax.random.split(key, 3)

    model = SimpleModelPallas(config, k_model)

    batch, seq = 2, 8
    idx = jax.random.randint(k_idx, (batch, seq), 0, config["vocab_size"],
                             dtype=jnp.int32)
    targets = jax.random.randint(k_tgt, (batch, seq), 0, config["vocab_size"],
                                 dtype=jnp.int32)

    # Inference path (targets=None).
    logits = model(idx)
    logits = jax.block_until_ready(logits)
    assert logits.shape == (batch, seq, config["vocab_size"])

    # Training path (logits, loss) with in-kernel cross-entropy stats.
    logits2, loss = model(idx, targets)
    loss = jax.block_until_ready(loss)

    # Pure-JAX reference of the same bf16 math.
    v, d = config["vocab_size"], config["d_model"]
    x = jnp.take(model.emb, idx.reshape(-1), axis=0)                  # f32
    x_bf = x.astype(jnp.bfloat16).astype(jnp.float32)
    h = jnp.maximum(x_bf @ model.w1.astype(jnp.float32) + model.b1, 0.0)
    h_bf = h.astype(jnp.bfloat16).astype(jnp.float32)                 # matches kernel h
    ref_flat = (h_bf @ model.w2.astype(jnp.float32) + model.b2)[:, :v]
    ref = ref_flat.reshape(batch, seq, v)
    lse_ref = jax.nn.logsumexp(ref_flat, axis=-1)
    picked_ref = jnp.take_along_axis(ref_flat, targets.reshape(-1, 1), axis=-1)[:, 0]
    loss_ref = jnp.mean(lse_ref - picked_ref)

    assert jnp.allclose(logits, ref, atol=2e-2, rtol=2e-2)
    assert jnp.allclose(logits2, ref, atol=2e-2, rtol=2e-2)
    assert jnp.allclose(loss, loss_ref, atol=2e-2, rtol=2e-2)
    assert jnp.isfinite(loss)

    print("KERNEL_OK")
</pallas_src>

<mosaic_0001>
module attributes {stable_mosaic.version = 11 : i64} {
  func.func @_fused_kernel(%arg0: i32, %arg1: i32, %arg2: memref<128xi32, #tpu.memory_space<smem>>, %arg3: memref<128x1xi32, #tpu.memory_space<vmem>>, %arg4: memref<256x128xf32, #tpu.memory_space<any>>, %arg5: memref<128x128xbf16, #tpu.memory_space<vmem>>, %arg6: memref<1x128xf32, #tpu.memory_space<vmem>>, %arg7: memref<128x256xbf16, #tpu.memory_space<vmem>>, %arg8: memref<1x256xf32, #tpu.memory_space<vmem>>, %arg9: memref<128x256xf32, #tpu.memory_space<vmem>>, %arg10: memref<128x1xf32, #tpu.memory_space<vmem>>, %arg11: memref<128x1xf32, #tpu.memory_space<vmem>>, %arg12: memref<128x128xf32, #tpu.memory_space<vmem>>, %arg13: memref<128x128xbf16, #tpu.memory_space<vmem>>, %arg14: memref<128x1xf32, #tpu.memory_space<vmem>>, %arg15: memref<128x1xf32, #tpu.memory_space<vmem>>, %arg16: memref<128x1xf32, #tpu.memory_space<vmem>>, %arg17: memref<!tpu.dma_semaphore, #tpu.memory_space<semaphore_mem>>) attributes {dimension_semantics = [#tpu.dimension_semantics<parallel>, #tpu.dimension_semantics<arbitrary>], iteration_bounds = array<i64: 1, 1>, scalar_prefetch = 1 : i64, scratch_operands = 6 : i64, tpu.core_type = #tpu.core_type<tc>, window_params = [{transform_indices = @transform_0, window_bounds = array<i64: 128, 1>}, {}, {pipeline_mode = #tpu.pipeline_mode<synchronous>, transform_indices = @transform_2, window_bounds = array<i64: 128, 128>}, {pipeline_mode = #tpu.pipeline_mode<synchronous>, transform_indices = @transform_3, window_bounds = array<i64: 1, 128>}, {transform_indices = @transform_4, window_bounds = array<i64: 128, 256>}, {transform_indices = @transform_5, window_bounds = array<i64: 1, 256>}, {transform_indices = @transform_6, window_bounds = array<i64: 128, 256>}, {transform_indices = @transform_7, window_bounds = array<i64: 128, 1>}, {transform_indices = @transform_8, window_bounds = array<i64: 128, 1>}]} {
    %c0_i32 = arith.constant 0 : i32
    %0 = arith.cmpi eq, %arg1, %c0_i32 : i32
    %1 = arith.extui %0 : i1 to i32
    %c0_i32_0 = arith.constant 0 : i32
    %2 = arith.cmpi ne, %1, %c0_i32_0 : i32
    scf.if %2 {
      %c128_i32 = arith.constant 128 : i32
      %13 = arith.muli %arg0, %c128_i32 : i32
      %c0_i32_10 = arith.constant 0 : i32
      %c128_i32_11 = arith.constant 128 : i32
      %14 = arith.addi %c0_i32_10, %c128_i32_11 : i32
      %c1_i32 = arith.constant 1 : i32
      scf.for %arg18 = %c0_i32_10 to %14 step %c1_i32  : i32 {
        %c1_i32_27 = arith.constant 1 : i32
        %27 = arith.muli %arg18, %c1_i32_27 : i32
        %c0_i32_28 = arith.constant 0 : i32
        %28 = arith.addi %c0_i32_28, %27 : i32
        %29 = arith.addi %13, %28 : i32
        %30 = arith.index_cast %29 : i32 to index
        %31 = memref.load %arg2[%30] : memref<128xi32, #tpu.memory_space<smem>>
        %c0_i32_29 = arith.constant 0 : i32
        %32 = tpu.memref_slice %arg4[%31, %c0_i32_29] : memref<256x128xf32, #tpu.memory_space<any>> -> memref<1x128xf32, #tpu.memory_space<any>>
        %c0_i32_30 = arith.constant 0 : i32
        %33 = tpu.memref_slice %arg12[%28, %c0_i32_30] : memref<128x128xf32, #tpu.memory_space<vmem>> -> memref<1x128xf32, #tpu.memory_space<vmem>>
        tpu.enqueue_dma source(%32 : memref<1x128xf32, #tpu.memory_space<any>>) target(%33 : memref<1x128xf32, #tpu.memory_space<vmem>>) target_semaphore(%arg17 : memref<!tpu.dma_semaphore, #tpu.memory_space<semaphore_mem>>)
      }
      %c128_i32_12 = arith.constant 128 : i32
      %c0_i32_13 = arith.constant 0 : i32
      %c128_i32_14 = arith.constant 128 : i32
      %15 = arith.addi %c0_i32_13, %c128_i32_14 : i32
      %c1_i32_15 = arith.constant 1 : i32
      scf.for %arg18 = %c0_i32_13 to %15 step %c1_i32_15  : i32 {
        %c1_i32_27 = arith.constant 1 : i32
        %27 = arith.muli %arg18, %c1_i32_27 : i32
        %c0_i32_28 = arith.constant 0 : i32
        %28 = arith.addi %c0_i32_28, %27 : i32
        %29 = arith.addi %13, %28 : i32
        %30 = arith.index_cast %29 : i32 to index
        %31 = memref.load %arg2[%30] : memref<128xi32, #tpu.memory_space<smem>>
        %c0_i32_29 = arith.constant 0 : i32
        %32 = tpu.memref_slice %arg4[%31, %c0_i32_29] : memref<256x128xf32, #tpu.memory_space<any>> -> memref<1x128xf32, #tpu.memory_space<any>>
        %c0_i32_30 = arith.constant 0 : i32
        %33 = tpu.memref_slice %arg12[%28, %c0_i32_30] : memref<128x128xf32, #tpu.memory_space<vmem>> -> memref<1x128xf32, #tpu.memory_space<vmem>>
        tpu.wait_dma2 semaphore(%arg17 : memref<!tpu.dma_semaphore, #tpu.memory_space<semaphore_mem>>) src(%32 : memref<1x128xf32, #tpu.memory_space<any>>) dst(%33 : memref<1x128xf32, #tpu.memory_space<vmem>>)
      }
      %c128_i32_16 = arith.constant 128 : i32
      %c0_17 = arith.constant 0 : index
      %c0_18 = arith.constant 0 : index
      %16 = vector.load %arg12[%c0_17, %c0_18] : memref<128x128xf32, #tpu.memory_space<vmem>>, vector<128x128xf32>
      %17 = arith.truncf %16 : vector<128x128xf32> to vector<128x128xbf16>
      %c0_19 = arith.constant 0 : index
      %c0_20 = arith.constant 0 : index
      %18 = vector.load %arg5[%c0_19, %c0_20] : memref<128x128xbf16, #tpu.memory_space<vmem>>, vector<128x128xbf16>
      %cst_21 = arith.constant dense<0.000000e+00> : vector<128x128xf32>
      %19 = tpu.matmul %17, %18, %cst_21 {dimension_numbers = #tpu.dot_dimension_numbers<[1], [0], [0], [1], [0, 0, 1, 1], [], []>} : vector<128x128xbf16>, vector<128x128xbf16>, vector<128x128xf32> -> vector<128x128xf32>
      %c0_22 = arith.constant 0 : index
      %c0_23 = arith.constant 0 : index
      %20 = vector.load %arg6[%c0_22, %c0_23] : memref<1x128xf32, #tpu.memory_space<vmem>>, vector<1x128xf32>
      %21 = vector.broadcast %20 : vector<1x128xf32> to vector<128x128xf32>
      %22 = arith.addf %19, %21 : vector<128x128xf32>
      %cst_24 = arith.constant 0.000000e+00 : f32
      %23 = vector.broadcast %cst_24 : f32 to vector<128x128xf32>
      %24 = arith.maximumf %22, %23 : vector<128x128xf32>
      %25 = arith.truncf %24 : vector<128x128xf32> to vector<128x128xbf16>
      %c0_25 = arith.constant 0 : index
      %c0_26 = arith.constant 0 : index
      %26 = vector.load %arg13[%c0_25, %c0_26] : memref<128x128xbf16, #tpu.memory_space<vmem>>, vector<128x128xbf16>
      tpu.vector_store %arg13[%c0_25, %c0_26], %25 {strides = array<i32>} : memref<128x128xbf16, #tpu.memory_space<vmem>>, vector<128x128xbf16>,
    } else {
    }
    %c0 = arith.constant 0 : index
    %c0_1 = arith.constant 0 : index
    %3 = vector.load %arg13[%c0, %c0_1] : memref<128x128xbf16, #tpu.memory_space<vmem>>, vector<128x128xbf16>
    %c0_2 = arith.constant 0 : index
    %c0_3 = arith.constant 0 : index
    %4 = vector.load %arg7[%c0_2, %c0_3] : memref<128x256xbf16, #tpu.memory_space<vmem>>, vector<128x256xbf16>
    %cst = arith.constant dense<0.000000e+00> : vector<128x256xf32>
    %5 = tpu.matmul %3, %4, %cst {dimension_numbers = #tpu.dot_dimension_numbers<[1], [0], [0], [1], [0, 0, 1, 1], [], []>} : vector<128x128xbf16>, vector<128x256xbf16>, vector<128x256xf32> -> vector<128x256xf32>
    %c0_4 = arith.constant 0 : index
    %c0_5 = arith.constant 0 : index
    %6 = vector.load %arg8[%c0_4, %c0_5] : memref<1x256xf32, #tpu.memory_space<vmem>>, vector<1x256xf32>
    %7 = vector.broadcast %6 : vector<1x256xf32> to vector<128x256xf32>
    %8 = arith.addf %5, %7 : vector<128x256xf32>
    %c0_6 = arith.constant 0 : index
    %c0_7 = arith.constant 0 : index
    %9 = vector.load %arg9[%c0_6, %c0_7] : memref<128x256xf32, #tpu.memory_space<vmem>>, vector<128x256xf32>
    tpu.vector_store %arg9[%c0_6, %c0_7], %8 {strides = array<i32>} : memref<128x256xf32, #tpu.memory_space<vmem>>, vector<128x256xf32>,
    %c0_i32_8 = arith.constant 0 : i32
    %10 = arith.cmpi eq, %arg1, %c0_i32_8 : i32
    %11 = arith.extui %10 : i1 to i32
    %c0_i32_9 = arith.constant 0 : i32
    %12 = arith.cmpi ne, %11, %c0_i32_9 : i32
    scf.if %12 {
      %cst_10 = arith.constant 0.000000e+00 : f32
      %13 = vector.broadcast %cst_10 : f32 to vector<128x1xf32>
      %c0_11 = arith.constant 0 : index
      %c0_12 = arith.constant 0 : index
      %14 = vector.load %arg10[%c0_11, %c0_12] : memref<128x1xf32, #tpu.memory_space<vmem>>, vector<128x1xf32>
      tpu.vector_store %arg10[%c0_11, %c0_12], %13 {strides = array<i32>} : memref<128x1xf32, #tpu.memory_space<vmem>>, vector<128x1xf32>,
      %cst_13 = arith.constant 0.000000e+00 : f32
      %15 = vector.broadcast %cst_13 : f32 to vector<128x1xf32>
      %c0_14 = arith.constant 0 : index
      %c0_15 = arith.constant 0 : index
      %16 = vector.load %arg11[%c0_14, %c0_15] : memref<128x1xf32, #tpu.memory_space<vmem>>, vector<128x1xf32>
      tpu.vector_store %arg11[%c0_14, %c0_15], %15 {strides = array<i32>} : memref<128x1xf32, #tpu.memory_space<vmem>>, vector<128x1xf32>,
    } else {
    }
    return
  }
  func.func @transform_0(%arg0: i32, %arg1: i32, %arg2: memref<128xi32, #tpu.memory_space<smem>>) -> (i32, i32) {
    %c0_i32 = arith.constant 0 : i32
    %c0_i32_0 = arith.constant 0 : i32
    return %arg0, %c0_i32 : i32, i32
  }
  func.func @transform_2(%arg0: i32, %arg1: i32, %arg2: memref<128xi32, #tpu.memory_space<smem>>) -> (i32, i32) {
    %c0_i32 = arith.constant 0 : i32
    %c0_i32_0 = arith.constant 0 : i32
    %c0_i32_1 = arith.constant 0 : i32
    return %c0_i32, %c0_i32_0 : i32, i32
  }
  func.func @transform_3(%arg0: i32, %arg1: i32, %arg2: memref<128xi32, #tpu.memory_space<smem>>) -> (i32, i32) {
    %c0_i32 = arith.constant 0 : i32
    %c0_i32_0 = arith.constant 0 : i32
    %c0_i32_1 = arith.constant 0 : i32
    return %c0_i32, %c0_i32_0 : i32, i32
  }
  func.func @transform_4(%arg0: i32, %arg1: i32, %arg2: memref<128xi32, #tpu.memory_space<smem>>) -> (i32, i32) {
    %c0_i32 = arith.constant 0 : i32
    %c0_i32_0 = arith.constant 0 : i32
    return %c0_i32, %arg1 : i32, i32
  }
  func.func @transform_5(%arg0: i32, %arg1: i32, %arg2: memref<128xi32, #tpu.memory_space<smem>>) -> (i32, i32) {
    %c0_i32 = arith.constant 0 : i32
    %c0_i32_0 = arith.constant 0 : i32
    return %c0_i32, %arg1 : i32, i32
  }
  func.func @transform_6(%arg0: i32, %arg1: i32, %arg2: memref<128xi32, #tpu.memory_space<smem>>) -> (i32, i32) {
    %c0_i32 = arith.constant 0 : i32
    return %arg0, %arg1 : i32, i32
  }
  func.func @transform_7(%arg0: i32, %arg1: i32, %arg2: memref<128xi32, #tpu.memory_space<smem>>) -> (i32, i32) {
    %c0_i32 = arith.constant 0 : i32
    %c0_i32_0 = arith.constant 0 : i32
    return %arg0, %c0_i32 : i32, i32
  }
  func.func @transform_8(%arg0: i32, %arg1: i32, %arg2: memref<128xi32, #tpu.memory_space<smem>>) -> (i32, i32) {
    %c0_i32 = arith.constant 0 : i32
    %c0_i32_0 = arith.constant 0 : i32
    return %arg0, %c0_i32 : i32, i32
  }
}

</mosaic_0001>

<llo_original>
// kernel: fused_forward.1
$region0: #{fused_forward.1}
  #allocation0 [shape = 'u32[]', space=smem, size = 0x4, offset = 0x4, fixed_abs, tag = 'smem constant byte address 0x4 - core index']
  #allocation1 [shape = 'u32[72,128]{1,0:T(1,128)}', space=vmem, size = 0x9000, scoped, tag = 'internal scratch']
  #allocation2 [shape = 'f32[128,128]{1,0:T(8,128)}', space=vmem, size = 0x10000, scoped, tag = 'scratch operand']
  #allocation3 [shape = 'bf16[128,128]{1,0:T(8,128)(2,1)}', space=vmem, size = 0x8000, scoped, tag = 'scratch operand']
  #allocation4 [shape = 'f32[128,1]{1,0:T(8,128)}', space=vmem, size = 0x10000, scoped, tag = 'scratch operand']
  #allocation5 [shape = 'f32[128,1]{1,0:T(8,128)}', space=vmem, size = 0x10000, scoped, tag = 'scratch operand']
  #allocation6 [shape = 'f32[128,1]{1,0:T(8,128)}', space=vmem, size = 0x10000, scoped, tag = 'scratch operand']
  #allocation7 [shape = 's32[1]{0}', space=sflag, size = 0x4, scoped, tag = 'scratch operand']
  #allocation8 [shape = 's32[1]{0}', space=sflag, size = 0x4, scoped, tag = 'scoped memory for fused_forward.1']
  #allocation9 [shape = 'u8[512]{0}', space=smem, size = 0x200, scoped, tag = 'prefetched SMEM operand 0']
  #allocation14 [shape = 's32[]', space=sflag, size = 0x4, offset = 0, fixed_abs, tag = 'sflag constant byte address 0x0 - dummy sync flag']
  #allocation15 [shape = 's32[]', space=sflag, size = 0x4, offset = 0, fixed_abs, tag = 'sflag constant byte address 0x0 - dummy sync flag']
  #allocation16 [shape = 'u32[]', space=smem, size = 0x4, offset = 0x44, fixed_abs, tag = 'smem constant byte address 0x44 - assertion arg 0']
  #allocation17 [shape = 'u32[]', space=smem, size = 0x4, offset = 0x48, fixed_abs, tag = 'smem constant byte address 0x48 - assertion arg 1']
  %s0 = inlined_call_operand.vmem [shape: s32[128], index: 0, kind: input, shape index: {}]
  %s1 = inlined_call_operand.vmem [shape: s32[128,1], index: 1, kind: input, shape index: {}]
  %s2 = inlined_call_operand.hbm [shape: f32[256,128], index: 2, kind: input, shape index: {}]
  %s3 = inlined_call_operand.hbm [shape: bf16[128,128], index: 3, kind: input, shape index: {}]
  %s4 = inlined_call_operand.vmem [shape: f32[1,128], index: 4, kind: input, shape index: {}]
  %s5 = inlined_call_operand.vmem [shape: bf16[128,256], index: 5, kind: input, shape index: {}]
  %s6 = inlined_call_operand.vmem [shape: f32[1,256], index: 6, kind: input, shape index: {}]
  %s7 = inlined_call_operand.hbm [shape: f32[128,256], index: 7, kind: output, shape index: {0}]
  %s8 = inlined_call_operand.vmem [shape: f32[128,1], index: 8, kind: output, shape index: {1}]
  %s9 = inlined_call_operand.vmem [shape: f32[128,1], index: 9, kind: output, shape index: {2}]
  %10 = xla_tuple %s7, %s8, %s9
  %s11 = sld [smem:[#allocation0]]
  $region76: #{fused_forward.1} parent=0
    _
  %s13 = ssub.s32 1, %s11
  %s14 = scalar_select 0, %s13, %s11
  %s16 = sshll.u32 %s0, 4
  %s17 = int_to_ptr.vmem [resolvable:$true] %s16
  %19 = dma.vmem_to_smem %s17, 16, [#allocation9], [#allocation8]
  %21 = dma.done [#allocation8], 16
  %22 = sfence
  $region1: #{fused_forward.1} parent=0
    #allocation10 [shape = 'u8[32768]{0}', space=vmem, size = 0x8000, scoped, tag = 'input window, operand 3, single buffered']
    #allocation11 [shape = 's32[1]{0}', space=sflag, size = 0x4, scoped, tag = 'scoped memory for fused_forward.1']
    #allocation12 [shape = 's32[1]{0}', space=sflag, size = 0x4, scoped, tag = 'scoped memory for fused_forward.1']
    #allocation13 [shape = 'u8[131072]{0}', space=vmem, size = 0x20000, scoped, tag = 'output window, operand 0, single buffered']
    %23 = vsyncpa [#allocation11], 0
    %24 = vsyncpa [#allocation12], 0
    // Predicated region
    $region2: #{fused_forward.1} parent=1 // pred_check
      _
    $region3: #{fused_forward.1} parent=1 // pred_check_branch
      %26 = sbr.rel (0) target = $region5
    $region4: #{fused_forward.1} parent=1 // pred_region
      _
    $region5: #{fused_forward.1} parent=1 // pred_fallthru
      _
    // Predicated region
    $region6: #{fused_forward.1} parent=1 // pred_check
      _
    $region7: #{fused_forward.1} parent=1 // pred_check_branch
      %28 = sbr.rel (0) target = $region9
    $region8: #{fused_forward.1} parent=1 // pred_region
      %30 = vsyncadd [#allocation11], 0
      %s31 = sshll.u32 %s3, 4
      %s32 = int_to_ptr.hbm [resolvable:$true] %s31
      %s33 = sshll.u32 [#allocation10], 4
      %s34 = int_to_ptr.vmem [resolvable:$true] %s33
      %39 = dma.hbm_to_vmem [thread:$0]  %s32, 1024, %s34, [#allocation11], 64, 64, 4
    $region9: #{fused_forward.1} parent=1 // pred_fallthru
      _
    // Predicated region
    $region10: #{fused_forward.1} parent=1 // pred_check
      _
    $region11: #{fused_forward.1} parent=1 // pred_check_branch
      %41 = sbr.rel (0) target = $region13
    $region12: #{fused_forward.1} parent=1 // pred_region
      _
    $region13: #{fused_forward.1} parent=1 // pred_fallthru
      _
    // Predicated region
    $region14: #{fused_forward.1} parent=1 // pred_check
      _
    $region15: #{fused_forward.1} parent=1 // pred_check_branch
      %43 = sbr.rel (0) target = $region17
    $region16: #{fused_forward.1} parent=1 // pred_region
      _
    $region17: #{fused_forward.1} parent=1 // pred_fallthru
      _
    // Predicated region
    $region18: #{fused_forward.1} parent=1 // pred_check
      _
    $region19: #{fused_forward.1} parent=1 // pred_check_branch
      %45 = sbr.rel (0) target = $region21
    $region20: #{fused_forward.1} parent=1 // pred_region
      _
    $region21: #{fused_forward.1} parent=1 // pred_fallthru
      _
    // Predicated region
    $region22: #{fused_forward.1} parent=1 // pred_check
      _
    $region23: #{fused_forward.1} parent=1 // pred_check_branch
      %47 = sbr.rel (0) target = $region25
    $region24: #{fused_forward.1} parent=1 // pred_region
      %49 = dma.done [#allocation11], 1024
    $region25: #{fused_forward.1} parent=1 // pred_fallthru
      _
    %p50 = scmp.eq.s32.totalorder 0, 0
    // Predicated region
    $region26: #{fused_forward.1} parent=1 // pred_check
      %p51 = pneg %p50
    $region27: #{fused_forward.1} parent=1 // pred_check_branch
      %53 = sbr.rel (%p51) target = $region29
    $region28: #{fused_forward.1} parent=1 // pred_region
      %s54 = smul.u32 0, 128
      loop: start=0, step=1, limit=128
      $region30: #{fused_forward.1} parent=28 // loop_pre_header
        _
      $region31: #{fused_forward.1} parent=28 // loop_header
        %s56 = sphi 0, %s60
        %p57 = scmp.ge.s32.totalorder %s56, 128
      $region32: #{fused_forward.1} parent=28 // loop_header_branch
        %59 = sbr.rel (%p57) target = $region36
      $region33: #{fused_forward.1} parent=28 // loop_body
        %s61 = sadd.s32 %s54, %s56
        %s62 = sld [smem:[#allocation9 + %s61]]
        %s63 = scalar_lea.hbm %s2, %s62
        %s64 = scalar_lea.vmem [#allocation2], %s56
        // Predicated region
        $region37: #{fused_forward.1} parent=33 // pred_check
          _
        $region38: #{fused_forward.1} parent=33 // pred_check_branch
          %66 = sbr.rel target = $region40
        $region39: #{fused_forward.1} parent=33 // pred_region
          %67 = sst [smem:[#allocation16]] [#allocation15]
          %68 = sst [smem:[#allocation17]] [#allocation14]
        $region40: #{fused_forward.1} parent=33 // pred_fallthru
          _
        %70 = shalt.err (0)
        %s72 = sshll.u32 %s63, 4
        %s73 = int_to_ptr.hbm [resolvable:$true] %s72
        %s74 = sshll.u32 %s64, 4
        %s75 = int_to_ptr.vmem [resolvable:$true] %s74
        %77 = dma.hbm_to_vmem [thread:$0]  %s73, 16, %s75, [#allocation7]
      $region34: #{fused_forward.1} parent=28 // loop_footer
        %s60 = sadd.s32 1, %s56
      $region35: #{fused_forward.1} parent=28 // loop_footer_branch
        %55 = sbr.rel target = $region31
      $region36: #{fused_forward.1} parent=28 // loop_exit
        _
      loop: start=0, step=1, limit=128
      $region41: #{fused_forward.1} parent=28 // loop_pre_header
        _
      $region42: #{fused_forward.1} parent=28 // loop_header
        %s79 = sphi 0, %s83
        %p80 = scmp.ge.s32.totalorder %s79, 128
      $region43: #{fused_forward.1} parent=28 // loop_header_branch
        %82 = sbr.rel (%p80) target = $region47
      $region44: #{fused_forward.1} parent=28 // loop_body
        %s84 = sadd.s32 %s54, %s79
        %s85 = sld [smem:[#allocation9 + %s84]]
        %s86 = smul.u32 1, 1
        %s87 = sshll.u32 %s86, 4
        %88 = dma.done [#allocation7], %s87
      $region45: #{fused_forward.1} parent=28 // loop_footer
        %s83 = sadd.s32 1, %s79
      $region46: #{fused_forward.1} parent=28 // loop_footer_branch
        %78 = sbr.rel target = $region42
      $region47: #{fused_forward.1} parent=28 // loop_exit
        _
      %v89 = vld [vmem:[#allocation2] sm:$0xff]
      %v90 = vld [vmem:[#allocation2 + $0x8] sm:$0xff]
      %v91 = vld [vmem:[#allocation2 + $0x10] sm:$0xff]
      %v92 = vld [vmem:[#allocation2 + $0x18] sm:$0xff]
      %v93 = vld [vmem:[#allocation2 + $0x20] sm:$0xff]
      %v94 = vld [vmem:[#allocation2 + $0x28] sm:$0xff]
      %v95 = vld [vmem:[#allocation2 + $0x30] sm:$0xff]
      %v96 = vld [vmem:[#allocation2 + $0x38] sm:$0xff]
      %v97 = vld [vmem:[#allocation2 + $0x40] sm:$0xff]
      %v98 = vld [vmem:[#allocation2 + $0x48] sm:$0xff]
      %v99 = vld [vmem:[#allocation2 + $0x50] sm:$0xff]
      %v100 = vld [vmem:[#allocation2 + $0x58] sm:$0xff]
      %v101 = vld [vmem:[#allocation2 + $0x60] sm:$0xff]
      %v102 = vld [vmem:[#allocation2 + $0x68] sm:$0xff]
      %v103 = vld [vmem:[#allocation2 + $0x70] sm:$0xff]
      %v104 = vld [vmem:[#allocation2 + $0x78] sm:$0xff]
      %v105 = vpack.c.bf16 %v90, %v89
      %v106 = vpack.c.bf16 %v92, %v91
      %v107 = vpack.c.bf16 %v94, %v93
      %v108 = vpack.c.bf16 %v96, %v95
      %v109 = vpack.c.bf16 %v98, %v97
      %v110 = vpack.c.bf16 %v100, %v99
      %v111 = vpack.c.bf16 %v102, %v101
      %v112 = vpack.c.bf16 %v104, %v103
      %v113 = vld [vmem:[#allocation10] sm:$0xf]
      %v114 = vld [vmem:[#allocation10 + $0x4] sm:$0xf]
      %v115 = vld [vmem:[#allocation10 + $0x8] sm:$0xf]
      %v116 = vld [vmem:[#allocation10 + $0xc] sm:$0xf]
      %v117 = vld [vmem:[#allocation10 + $0x10] sm:$0xf]
      %v118 = vld [vmem:[#allocation10 + $0x14] sm:$0xf]
      %v119 = vld [vmem:[#allocation10 + $0x18] sm:$0xf]
      %v120 = vld [vmem:[#allocation10 + $0x1c] sm:$0xf]
      %v121 = vld [vmem:[#allocation10 + $0x20] sm:$0xf]
      %v122 = vld [vmem:[#allocation10 + $0x24] sm:$0xf]
      %v123 = vld [vmem:[#allocation10 + $0x28] sm:$0xf]
      %v124 = vld [vmem:[#allocation10 + $0x2c] sm:$0xf]
      %v125 = vld [vmem:[#allocation10 + $0x30] sm:$0xf]
      %v126 = vld [vmem:[#allocation10 + $0x34] sm:$0xf]
      %v127 = vld [vmem:[#allocation10 + $0x38] sm:$0xf]
      %v128 = vld [vmem:[#allocation10 + $0x3c] sm:$0xf]
      %v129 = vld [vmem:[%s4] sm:$0x1]
      %v131 = vperm.slane %v129, 0
      %v149 = vunpack.c.l.b16 %v113
      %v150 = vunpack.c.l.b16 %v114
      %v151 = vunpack.c.l.b16 %v115
      %v152 = vunpack.c.l.b16 %v116
      %v153 = vunpack.c.l.b16 %v117
      %v154 = vunpack.c.l.b16 %v118
      %v155 = vunpack.c.l.b16 %v119
      %v156 = vunpack.c.l.b16 %v120
      %v157 = vunpack.c.l.b16 %v121
      %v158 = vunpack.c.l.b16 %v122
      %v159 = vunpack.c.l.b16 %v123
      %v160 = vunpack.c.l.b16 %v124
      %v161 = vunpack.c.l.b16 %v125
      %v162 = vunpack.c.l.b16 %v126
      %v163 = vunpack.c.l.b16 %v127
      %v164 = vunpack.c.l.b16 %v128
      %v165 = vpack.c.b16 %v150, %v149
      %v166 = vpack.c.b16 %v152, %v151
      %v167 = vpack.c.b16 %v154, %v153
      %v168 = vpack.c.b16 %v156, %v155
      %v169 = vpack.c.b16 %v158, %v157
      %v170 = vpack.c.b16 %v160, %v159
      %v171 = vpack.c.b16 %v162, %v161
      %v172 = vpack.c.b16 %v164, %v163
      %181 = vmatpush.bf16.msra.mxu0 %v172
      %182 = vmatpush.bf16.msra.mxu0 %v171
      %183 = vmatpush.bf16.msra.mxu0 %v170
      %184 = vmatpush.bf16.msra.mxu0 %v169
      %185 = vmatpush.bf16.msra.mxu0 %v168
      %186 = vmatpush.bf16.msra.mxu0 %v167
      %187 = vmatpush.bf16.msra.mxu0 %v166
      %188 = vmatpush.bf16.msra.mxu0 %v165
      %189 = vmatmul.bf16.gmra.mxu0 %v105
      %v190 = vpop.f32.mrf.mxu0
      %v191 = vadd.f32 %v131, %v190
      %v192 = vpop.f32.mrf.mxu0
      %v193 = vadd.f32 %v131, %v192
      %194 = vmatmul.bf16.gmra.mxu0 %v106
      %v195 = vpop.f32.mrf.mxu0
      %v196 = vadd.f32 %v131, %v195
      %v197 = vpop.f32.mrf.mxu0
      %v198 = vadd.f32 %v131, %v197
      %199 = vmatmul.bf16.gmra.mxu0 %v107
      %v200 = vpop.f32.mrf.mxu0
      %v201 = vadd.f32 %v131, %v200
      %v202 = vpop.f32.mrf.mxu0
      %v203 = vadd.f32 %v131, %v202
      %204 = vmatmul.bf16.gmra.mxu0 %v108
      %v205 = vpop.f32.mrf.mxu0
      %v206 = vadd.f32 %v131, %v205
      %v207 = vpop.f32.mrf.mxu0
      %v208 = vadd.f32 %v131, %v207
      %209 = vmatmul.bf16.gmra.mxu0 %v109
      %v210 = vpop.f32.mrf.mxu0
      %v211 = vadd.f32 %v131, %v210
      %v212 = vpop.f32.mrf.mxu0
      %v213 = vadd.f32 %v131, %v212
      %214 = vmatmul.bf16.gmra.mxu0 %v110
      %v215 = vpop.f32.mrf.mxu0
      %v216 = vadd.f32 %v131, %v215
      %v217 = vpop.f32.mrf.mxu0
      %v218 = vadd.f32 %v131, %v217
      %219 = vmatmul.bf16.gmra.mxu0 %v111
      %v220 = vpop.f32.mrf.mxu0
      %v221 = vadd.f32 %v131, %v220
      %v222 = vpop.f32.mrf.mxu0
      %v223 = vadd.f32 %v131, %v222
      %224 = vmatmul.bf16.gmra.mxu0 %v112
      %v225 = vpop.f32.mrf.mxu0
      %v226 = vadd.f32 %v131, %v225
      %v227 = vpop.f32.mrf.mxu0
      %v228 = vadd.f32 %v131, %v227
      %229 = vdwg.mxu0
      %v230 = vmax.f32 %v191, 0.0
      %v231 = vmax.f32 %v193, 0.0
      %v232 = vmax.f32 %v196, 0.0
      %v233 = vmax.f32 %v198, 0.0
      %v234 = vmax.f32 %v201, 0.0
      %v235 = vmax.f32 %v203, 0.0
      %v236 = vmax.f32 %v206, 0.0
      %v237 = vmax.f32 %v208, 0.0
      %v238 = vmax.f32 %v211, 0.0
      %v239 = vmax.f32 %v213, 0.0
      %v240 = vmax.f32 %v216, 0.0
      %v241 = vmax.f32 %v218, 0.0
      %v242 = vmax.f32 %v221, 0.0
      %v243 = vmax.f32 %v223, 0.0
      %v244 = vmax.f32 %v226, 0.0
      %v245 = vmax.f32 %v228, 0.0
      %v246 = vpack.c.bf16 %v230, %v230
      %v247 = vpack.c.bf16 %v231, %v231
      %v248 = vpack.c.bf16 %v232, %v232
      %v249 = vpack.c.bf16 %v233, %v233
      %v250 = vpack.c.bf16 %v234, %v234
      %v251 = vpack.c.bf16 %v235, %v235
      %v252 = vpack.c.bf16 %v236, %v236
      %v253 = vpack.c.bf16 %v237, %v237
      %v254 = vpack.c.bf16 %v238, %v238
      %v255 = vpack.c.bf16 %v239, %v239
      %v256 = vpack.c.bf16 %v240, %v240
      %v257 = vpack.c.bf16 %v241, %v241
      %v258 = vpack.c.bf16 %v242, %v242
      %v259 = vpack.c.bf16 %v243, %v243
      %v260 = vpack.c.bf16 %v244, %v244
      %v261 = vpack.c.bf16 %v245, %v245
      %262 = vst [vmem:[#allocation3] sm:$0xf] %v246
      %263 = vst [vmem:[#allocation3 + $0x4] sm:$0xf] %v247
      %264 = vst [vmem:[#allocation3 + $0x8] sm:$0xf] %v248
      %265 = vst [vmem:[#allocation3 + $0xc] sm:$0xf] %v249
      %266 = vst [vmem:[#allocation3 + $0x10] sm:$0xf] %v250
      %267 = vst [vmem:[#allocation3 + $0x14] sm:$0xf] %v251
      %268 = vst [vmem:[#allocation3 + $0x18] sm:$0xf] %v252
      %269 = vst [vmem:[#allocation3 + $0x1c] sm:$0xf] %v253
      %270 = vst [vmem:[#allocation3 + $0x20] sm:$0xf] %v254
      %271 = vst [vmem:[#allocation3 + $0x24] sm:$0xf] %v255
      %272 = vst [vmem:[#allocation3 + $0x28] sm:$0xf] %v256
      %273 = vst [vmem:[#allocation3 + $0x2c] sm:$0xf] %v257
      %274 = vst [vmem:[#allocation3 + $0x30] sm:$0xf] %v258
      %275 = vst [vmem:[#allocation3 + $0x34] sm:$0xf] %v259
      %276 = vst [vmem:[#allocation3 + $0x38] sm:$0xf] %v260
      %277 = vst [vmem:[#allocation3 + $0x3c] sm:$0xf] %v261
    $region29: #{fused_forward.1} parent=1 // pred_fallthru
      _
    %v278 = vld [vmem:[#allocation3] sm:$0xf]
    %v279 = vld [vmem:[#allocation3 + $0x4] sm:$0xf]
    %v280 = vld [vmem:[#allocation3 + $0x8] sm:$0xf]
    %v281 = vld [vmem:[#allocation3 + $0xc] sm:$0xf]
    %v282 = vld [vmem:[#allocation3 + $0x10] sm:$0xf]
    %v283 = vld [vmem:[#allocation3 + $0x14] sm:$0xf]
    %v284 = vld [vmem:[#allocation3 + $0x18] sm:$0xf]
    %v285 = vld [vmem:[#allocation3 + $0x1c] sm:$0xf]
    %v286 = vld [vmem:[#allocation3 + $0x20] sm:$0xf]
    %v287 = vld [vmem:[#allocation3 + $0x24] sm:$0xf]
    %v288 = vld [vmem:[#allocation3 + $0x28] sm:$0xf]
    %v289 = vld [vmem:[#allocation3 + $0x2c] sm:$0xf]
    %v290 = vld [vmem:[#allocation3 + $0x30] sm:$0xf]
    %v291 = vld [vmem:[#allocation3 + $0x34] sm:$0xf]
    %v292 = vld [vmem:[#allocation3 + $0x38] sm:$0xf]
    %v293 = vld [vmem:[#allocation3 + $0x3c] sm:$0xf]
    %v294 = vld [vmem:[%s5] sm:$0xff]
    %v295 = vld [vmem:[%s5 + $0x8] sm:$0xff]
    %v296 = vld [vmem:[%s5 + $0x10] sm:$0xff]
    %v297 = vld [vmem:[%s5 + $0x18] sm:$0xff]
    %v298 = vld [vmem:[%s5 + $0x20] sm:$0xff]
    %v299 = vld [vmem:[%s5 + $0x28] sm:$0xff]
    %v300 = vld [vmem:[%s5 + $0x30] sm:$0xff]
    %v301 = vld [vmem:[%s5 + $0x38] sm:$0xff]
    %v302 = vld [vmem:[%s5 + $0x40] sm:$0xff]
    %v303 = vld [vmem:[%s5 + $0x48] sm:$0xff]
    %v304 = vld [vmem:[%s5 + $0x50] sm:$0xff]
    %v305 = vld [vmem:[%s5 + $0x58] sm:$0xff]
    %v306 = vld [vmem:[%s5 + $0x60] sm:$0xff]
    %v307 = vld [vmem:[%s5 + $0x68] sm:$0xff]
    %v308 = vld [vmem:[%s5 + $0x70] sm:$0xff]
    %v309 = vld [vmem:[%s5 + $0x78] sm:$0xff]
    %v310 = vld [vmem:[%s6] sm:$0x3]
    %v312 = vperm.slane %v310, 0
    %v313 = vperm.slane %v310, 1
    %v332 = vunpack.c.l.b16 %v278
    %v333 = vunpack.c.l.b16 %v279
    %v334 = vunpack.c.l.b16 %v280
    %v335 = vunpack.c.l.b16 %v281
    %v336 = vunpack.c.l.b16 %v282
    %v337 = vunpack.c.l.b16 %v283
    %v338 = vunpack.c.l.b16 %v284
    %v339 = vunpack.c.l.b16 %v285
    %v340 = vunpack.c.l.b16 %v286
    %v341 = vunpack.c.l.b16 %v287
    %v342 = vunpack.c.l.b16 %v288
    %v343 = vunpack.c.l.b16 %v289
    %v344 = vunpack.c.l.b16 %v290
    %v345 = vunpack.c.l.b16 %v291
    %v346 = vunpack.c.l.b16 %v292
    %v347 = vunpack.c.l.b16 %v293
    %v348 = vpack.c.b16 %v333, %v332
    %v349 = vpack.c.b16 %v335, %v334
    %v350 = vpack.c.b16 %v337, %v336
    %v351 = vpack.c.b16 %v339, %v338
    %v352 = vpack.c.b16 %v341, %v340
    %v353 = vpack.c.b16 %v343, %v342
    %v354 = vpack.c.b16 %v345, %v344
    %v355 = vpack.c.b16 %v347, %v346
    %v380 = vunpack.c.l.b16 %v294
    %v381 = vunpack.c.h.b16 %v294
    %v382 = vunpack.c.l.b16 %v295
    %v383 = vunpack.c.h.b16 %v295
    %v384 = vunpack.c.l.b16 %v296
    %v385 = vunpack.c.h.b16 %v296
    %v386 = vunpack.c.l.b16 %v297
    %v387 = vunpack.c.h.b16 %v297
    %v388 = vunpack.c.l.b16 %v298
    %v389 = vunpack.c.h.b16 %v298
    %v390 = vunpack.c.l.b16 %v299
    %v391 = vunpack.c.h.b16 %v299
    %v392 = vunpack.c.l.b16 %v300
    %v393 = vunpack.c.h.b16 %v300
    %v394 = vunpack.c.l.b16 %v301
    %v395 = vunpack.c.h.b16 %v301
    %v396 = vunpack.c.l.b16 %v302
    %v397 = vunpack.c.h.b16 %v302
    %v398 = vunpack.c.l.b16 %v303
    %v399 = vunpack.c.h.b16 %v303
    %v400 = vunpack.c.l.b16 %v304
    %v401 = vunpack.c.h.b16 %v304
    %v402 = vunpack.c.l.b16 %v305
    %v403 = vunpack.c.h.b16 %v305
    %v404 = vunpack.c.l.b16 %v306
    %v405 = vunpack.c.h.b16 %v306
    %v406 = vunpack.c.l.b16 %v307
    %v407 = vunpack.c.h.b16 %v307
    %v408 = vunpack.c.l.b16 %v308
    %v409 = vunpack.c.h.b16 %v308
    %v410 = vunpack.c.l.b16 %v309
    %v411 = vunpack.c.h.b16 %v309
    %v412 = vpack.c.b16 %v382, %v380
    %v413 = vpack.c.b16 %v383, %v381
    %v414 = vpack.c.b16 %v386, %v384
    %v415 = vpack.c.b16 %v387, %v385
    %v416 = vpack.c.b16 %v390, %v388
    %v417 = vpack.c.b16 %v391, %v389
    %v418 = vpack.c.b16 %v394, %v392
    %v419 = vpack.c.b16 %v395, %v393
    %v420 = vpack.c.b16 %v398, %v396
    %v421 = vpack.c.b16 %v399, %v397
    %v422 = vpack.c.b16 %v402, %v400
    %v423 = vpack.c.b16 %v403, %v401
    %v424 = vpack.c.b16 %v406, %v404
    %v425 = vpack.c.b16 %v407, %v405
    %v426 = vpack.c.b16 %v410, %v408
    %v427 = vpack.c.b16 %v411, %v409
    %444 = vmatpush.bf16.msra.mxu0 %v426
    %445 = vmatpush.bf16.msra.mxu0 %v424
    %446 = vmatpush.bf16.msra.mxu0 %v422
    %447 = vmatpush.bf16.msra.mxu0 %v420
    %448 = vmatpush.bf16.msra.mxu0 %v418
    %449 = vmatpush.bf16.msra.mxu0 %v416
    %450 = vmatpush.bf16.msra.mxu0 %v414
    %451 = vmatpush.bf16.msra.mxu0 %v412
    %452 = vmatmul.bf16.gmra.mxu0 %v348
    %v453 = vpop.f32.mrf.mxu0
    %v454 = vadd.f32 %v312, %v453
    %v455 = vpop.f32.mrf.mxu0
    %v456 = vadd.f32 %v312, %v455
    %457 = vmatmul.bf16.gmra.mxu0 %v349
    %v458 = vpop.f32.mrf.mxu0
    %v459 = vadd.f32 %v312, %v458
    %v460 = vpop.f32.mrf.mxu0
    %v461 = vadd.f32 %v312, %v460
    %462 = vmatmul.bf16.gmra.mxu0 %v350
    %v463 = vpop.f32.mrf.mxu0
    %v464 = vadd.f32 %v312, %v463
    %v465 = vpop.f32.mrf.mxu0
    %v466 = vadd.f32 %v312, %v465
    %467 = vmatmul.bf16.gmra.mxu0 %v351
    %v468 = vpop.f32.mrf.mxu0
    %v469 = vadd.f32 %v312, %v468
    %v470 = vpop.f32.mrf.mxu0
    %v471 = vadd.f32 %v312, %v470
    %472 = vmatmul.bf16.gmra.mxu0 %v352
    %v473 = vpop.f32.mrf.mxu0
    %v474 = vadd.f32 %v312, %v473
    %v475 = vpop.f32.mrf.mxu0
    %v476 = vadd.f32 %v312, %v475
    %477 = vmatmul.bf16.gmra.mxu0 %v353
    %v478 = vpop.f32.mrf.mxu0
    %v479 = vadd.f32 %v312, %v478
    %v480 = vpop.f32.mrf.mxu0
    %v481 = vadd.f32 %v312, %v480
    %482 = vmatmul.bf16.gmra.mxu0 %v354
    %v483 = vpop.f32.mrf.mxu0
    %v484 = vadd.f32 %v312, %v483
    %v485 = vpop.f32.mrf.mxu0
    %v486 = vadd.f32 %v312, %v485
    %487 = vmatmul.bf16.gmra.mxu0 %v355
    %v488 = vpop.f32.mrf.mxu0
    %v489 = vadd.f32 %v312, %v488
    %v490 = vpop.f32.mrf.mxu0
    %v491 = vadd.f32 %v312, %v490
    %492 = vdwg.mxu0
    %493 = vmatpush.bf16.msra.mxu0 %v427
    %494 = vmatpush.bf16.msra.mxu0 %v425
    %495 = vmatpush.bf16.msra.mxu0 %v423
    %496 = vmatpush.bf16.msra.mxu0 %v421
    %497 = vmatpush.bf16.msra.mxu0 %v419
    %498 = vmatpush.bf16.msra.mxu0 %v417
    %499 = vmatpush.bf16.msra.mxu0 %v415
    %500 = vmatpush.bf16.msra.mxu0 %v413
    %501 = vmatmul.bf16.gmra.mxu0 %v348
    %v502 = vpop.f32.mrf.mxu0
    %v503 = vadd.f32 %v313, %v502
    %v504 = vpop.f32.mrf.mxu0
    %v505 = vadd.f32 %v313, %v504
    %506 = vmatmul.bf16.gmra.mxu0 %v349
    %v507 = vpop.f32.mrf.mxu0
    %v508 = vadd.f32 %v313, %v507
    %v509 = vpop.f32.mrf.mxu0
    %v510 = vadd.f32 %v313, %v509
    %511 = vmatmul.bf16.gmra.mxu0 %v350
    %v512 = vpop.f32.mrf.mxu0
    %v513 = vadd.f32 %v313, %v512
    %v514 = vpop.f32.mrf.mxu0
    %v515 = vadd.f32 %v313, %v514
    %516 = vmatmul.bf16.gmra.mxu0 %v351
    %v517 = vpop.f32.mrf.mxu0
    %v518 = vadd.f32 %v313, %v517
    %v519 = vpop.f32.mrf.mxu0
    %v520 = vadd.f32 %v313, %v519
    %521 = vmatmul.bf16.gmra.mxu0 %v352
    %v522 = vpop.f32.mrf.mxu0
    %v523 = vadd.f32 %v313, %v522
    %v524 = vpop.f32.mrf.mxu0
    %v525 = vadd.f32 %v313, %v524
    %526 = vmatmul.bf16.gmra.mxu0 %v353
    %v527 = vpop.f32.mrf.mxu0
    %v528 = vadd.f32 %v313, %v527
    %v529 = vpop.f32.mrf.mxu0
    %v530 = vadd.f32 %v313, %v529
    %531 = vmatmul.bf16.gmra.mxu0 %v354
    %v532 = vpop.f32.mrf.mxu0
    %v533 = vadd.f32 %v313, %v532
    %v534 = vpop.f32.mrf.mxu0
    %v535 = vadd.f32 %v313, %v534
    %536 = vmatmul.bf16.gmra.mxu0 %v355
    %v537 = vpop.f32.mrf.mxu0
    %v538 = vadd.f32 %v313, %v537
    %v539 = vpop.f32.mrf.mxu0
    %v540 = vadd.f32 %v313, %v539
    %541 = vdwg.mxu0
    %542 = vst [vmem:[#allocation13] sm:$0xff] %v454
    %543 = vst [vmem:[#allocation13 + $0x8] sm:$0xff] %v503
    %544 = vst [vmem:[#allocation13 + $0x10] sm:$0xff] %v456
    %545 = vst [vmem:[#allocation13 + $0x18] sm:$0xff] %v505
    %546 = vst [vmem:[#allocation13 + $0x20] sm:$0xff] %v459
    %547 = vst [vmem:[#allocation13 + $0x28] sm:$0xff] %v508
    %548 = vst [vmem:[#allocation13 + $0x30] sm:$0xff] %v461
    %549 = vst [vmem:[#allocation13 + $0x38] sm:$0xff] %v510
    %550 = vst [vmem:[#allocation13 + $0x40] sm:$0xff] %v464
    %551 = vst [vmem:[#allocation13 + $0x48] sm:$0xff] %v513
    %552 = vst [vmem:[#allocation13 + $0x50] sm:$0xff] %v466
    %553 = vst [vmem:[#allocation13 + $0x58] sm:$0xff] %v515
    %554 = vst [vmem:[#allocation13 + $0x60] sm:$0xff] %v469
    %555 = vst [vmem:[#allocation13 + $0x68] sm:$0xff] %v518
    %556 = vst [vmem:[#allocation13 + $0x70] sm:$0xff] %v471
    %557 = vst [vmem:[#allocation13 + $0x78] sm:$0xff] %v520
    %558 = vst [vmem:[#allocation13 + $0x80] sm:$0xff] %v474
    %559 = vst [vmem:[#allocation13 + $0x88] sm:$0xff] %v523
    %560 = vst [vmem:[#allocation13 + $0x90] sm:$0xff] %v476
    %561 = vst [vmem:[#allocation13 + $0x98] sm:$0xff] %v525
    %562 = vst [vmem:[#allocation13 + $0xa0] sm:$0xff] %v479
    %563 = vst [vmem:[#allocation13 + $0xa8] sm:$0xff] %v528
    %564 = vst [vmem:[#allocation13 + $0xb0] sm:$0xff] %v481
    %565 = vst [vmem:[#allocation13 + $0xb8] sm:$0xff] %v530
    %566 = vst [vmem:[#allocation13 + $0xc0] sm:$0xff] %v484
    %567 = vst [vmem:[#allocation13 + $0xc8] sm:$0xff] %v533
    %568 = vst [vmem:[#allocation13 + $0xd0] sm:$0xff] %v486
    %569 = vst [vmem:[#allocation13 + $0xd8] sm:$0xff] %v535
    %570 = vst [vmem:[#allocation13 + $0xe0] sm:$0xff] %v489
    %571 = vst [vmem:[#allocation13 + $0xe8] sm:$0xff] %v538
    %572 = vst [vmem:[#allocation13 + $0xf0] sm:$0xff] %v491
    %573 = vst [vmem:[#allocation13 + $0xf8] sm:$0xff] %v540
    // Predicated region
    $region48: #{fused_forward.1} parent=1 // pred_check
      %p574 = pneg %p50
    $region49: #{fused_forward.1} parent=1 // pred_check_branch
      %576 = sbr.rel (%p574) target = $region51
    $region50: #{fused_forward.1} parent=1 // pred_region
      %vm577 = vcmask 7168
      %578 = vst.msk [vmem:[%s8] sm:$0xff] %vm577, 0.0
      %579 = vst.msk [vmem:[%s8 + $0x8] sm:$0xff] %vm577, 0.0
      %580 = vst.msk [vmem:[%s8 + $0x10] sm:$0xff] %vm577, 0.0
      %581 = vst.msk [vmem:[%s8 + $0x18] sm:$0xff] %vm577, 0.0
      %582 = vst.msk [vmem:[%s8 + $0x20] sm:$0xff] %vm577, 0.0
      %583 = vst.msk [vmem:[%s8 + $0x28] sm:$0xff] %vm577, 0.0
      %584 = vst.msk [vmem:[%s8 + $0x30] sm:$0xff] %vm577, 0.0
      %585 = vst.msk [vmem:[%s8 + $0x38] sm:$0xff] %vm577, 0.0
      %586 = vst.msk [vmem:[%s8 + $0x40] sm:$0xff] %vm577, 0.0
      %587 = vst.msk [vmem:[%s8 + $0x48] sm:$0xff] %vm577, 0.0
      %588 = vst.msk [vmem:[%s8 + $0x50] sm:$0xff] %vm577, 0.0
      %589 = vst.msk [vmem:[%s8 + $0x58] sm:$0xff] %vm577, 0.0
      %590 = vst.msk [vmem:[%s8 + $0x60] sm:$0xff] %vm577, 0.0
      %591 = vst.msk [vmem:[%s8 + $0x68] sm:$0xff] %vm577, 0.0
      %592 = vst.msk [vmem:[%s8 + $0x70] sm:$0xff] %vm577, 0.0
      %593 = vst.msk [vmem:[%s8 + $0x78] sm:$0xff] %vm577, 0.0
      %594 = vst.msk [vmem:[%s9] sm:$0xff] %vm577, 0.0
      %595 = vst.msk [vmem:[%s9 + $0x8] sm:$0xff] %vm577, 0.0
      %596 = vst.msk [vmem:[%s9 + $0x10] sm:$0xff] %vm577, 0.0
      %597 = vst.msk [vmem:[%s9 + $0x18] sm:$0xff] %vm577, 0.0
      %598 = vst.msk [vmem:[%s9 + $0x20] sm:$0xff] %vm577, 0.0
      %599 = vst.msk [vmem:[%s9 + $0x28] sm:$0xff] %vm577, 0.0
      %600 = vst.msk [vmem:[%s9 + $0x30] sm:$0xff] %vm577, 0.0
      %601 = vst.msk [vmem:[%s9 + $0x38] sm:$0xff] %vm577, 0.0
      %602 = vst.msk [vmem:[%s9 + $0x40] sm:$0xff] %vm577, 0.0
      %603 = vst.msk [vmem:[%s9 + $0x48] sm:$0xff] %vm577, 0.0
      %604 = vst.msk [vmem:[%s9 + $0x50] sm:$0xff] %vm577, 0.0
      %605 = vst.msk [vmem:[%s9 + $0x58] sm:$0xff] %vm577, 0.0
      %606 = vst.msk [vmem:[%s9 + $0x60] sm:$0xff] %vm577, 0.0
      %607 = vst.msk [vmem:[%s9 + $0x68] sm:$0xff] %vm577, 0.0
      %608 = vst.msk [vmem:[%s9 + $0x70] sm:$0xff] %vm577, 0.0
      %609 = vst.msk [vmem:[%s9 + $0x78] sm:$0xff] %vm577, 0.0
    $region51: #{fused_forward.1} parent=1 // pred_fallthru
      _
    // Predicated region
    $region52: #{fused_forward.1} parent=1 // pred_check
      _
    $region53: #{fused_forward.1} parent=1 // pred_check_branch
      %611 = sbr.rel (0) target = $region55
    $region54: #{fused_forward.1} parent=1 // pred_region
      %613 = vsyncadd [#allocation12], 0
      %s614 = sshll.u32 [#allocation13], 4
      %s615 = int_to_ptr.vmem [resolvable:$true] %s614
      %s616 = sshll.u32 %s7, 4
      %s617 = int_to_ptr.hbm [resolvable:$true] %s616
      %622 = dma.vmem_to_hbm [thread:$0]  %s615, 4096, %s617, [#allocation12], 256, 256, 16
    $region55: #{fused_forward.1} parent=1 // pred_fallthru
      _
    // Predicated region
    $region56: #{fused_forward.1} parent=1 // pred_check
      _
    $region57: #{fused_forward.1} parent=1 // pred_check_branch
      %624 = sbr.rel (0) target = $region59
    $region58: #{fused_forward.1} parent=1 // pred_region
      _
    $region59: #{fused_forward.1} parent=1 // pred_fallthru
      _
    // Predicated region
    $region60: #{fused_forward.1} parent=1 // pred_check
      _
    $region61: #{fused_forward.1} parent=1 // pred_check_branch
      %626 = sbr.rel (0) target = $region63
    $region62: #{fused_forward.1} parent=1 // pred_region
      _
    $region63: #{fused_forward.1} parent=1 // pred_fallthru
      _
    // Predicated region
    $region64: #{fused_forward.1} parent=1 // pred_check
      _
    $region65: #{fused_forward.1} parent=1 // pred_check_branch
      %628 = sbr.rel (0) target = $region67
    $region66: #{fused_forward.1} parent=1 // pred_region
      %630 = dma.done [#allocation12], 4096
    $region67: #{fused_forward.1} parent=1 // pred_fallthru
      _
    // Predicated region
    $region68: #{fused_forward.1} parent=1 // pred_check
      _
    $region69: #{fused_forward.1} parent=1 // pred_check_branch
      %632 = sbr.rel (0) target = $region71
    $region70: #{fused_forward.1} parent=1 // pred_region
      _
    $region71: #{fused_forward.1} parent=1 // pred_fallthru
      _
    // Predicated region
    $region72: #{fused_forward.1} parent=1 // pred_check
      _
    $region73: #{fused_forward.1} parent=1 // pred_check_branch
      %634 = sbr.rel (0) target = $region75
    $region74: #{fused_forward.1} parent=1 // pred_region
      _
    $region75: #{fused_forward.1} parent=1 // pred_fallthru
      _
    %635 = vsyncpa [#allocation11], 1
    %636 = vsyncpa [#allocation12], 1
  %637 = vsyncmov [#allocation7]
  %s638 = vpop.sfrf %637
  %p639 = scmp.eq.s32.totalorder %s638, 0
  %p640 = pneg %p639
  %642 = shalt.err (%p640)

</llo_original>
